<compile_context>
chip_gen: v7x
topology: tpu7x:2x2x1
jax: 0.10.0
libtpu: 0.0.40
codegen_flags: <defaults>
</compile_context>

<pallas_src>
import jax
import jax.numpy as jnp
from jax.experimental import pallas as pl
from jax.experimental.pallas import tpu as pltpu

MAX_BLOCK_B = 1024  # max batch tile (multiple of 8); ~a few MiB of VMEM max


def _round_up(n, m):
    return ((n + m - 1) // m) * m


def _cdiv(a, b):
    return -(-a // b)


def _choose_tile(B, max_block_b):
    """Balanced batch tiling: pad < 8 rows per tile, >=2 tiles when B > 8."""
    n_tiles = max(_cdiv(B, max_block_b), min(2, _cdiv(B, 8)))
    tm = _round_up(_cdiv(B, n_tiles), 8)
    return tm, n_tiles * tm


def _sigmoid(z):
    # Single transcendental (tanh) per element instead of exp + divide.
    return 0.5 * (jnp.tanh(0.5 * z) + 1.0)


def _mlp(x_ref, w1_ref, b1_ref, w2_ref, b2_ref, w3_ref, b3_ref):
    # bf16 MXU inputs with f32 accumulation; the x cast is a free VPU op here.
    x = x_ref[...].astype(jnp.bfloat16)
    h1 = jnp.dot(x, w1_ref[...], preferred_element_type=jnp.float32)
    h1 = _sigmoid(h1 + b1_ref[...])
    h2 = jnp.dot(h1.astype(jnp.bfloat16), w2_ref[...],
                 preferred_element_type=jnp.float32)
    h2 = _sigmoid(h2 + b2_ref[...])
    y = jnp.dot(h2.astype(jnp.bfloat16), w3_ref[...],
                preferred_element_type=jnp.float32)
    return jnp.tanh(y + b3_ref[...])


def actor_kernel(amp_ref, x_ref, w1_ref, b1_ref, w2_ref, b2_ref, w3_ref,
                 b3_ref, noise_ref, o_ref):
    y = _mlp(x_ref, w1_ref, b1_ref, w2_ref, b2_ref, w3_ref, b3_ref)
    o_ref[...] = y + amp_ref[0, 0] * noise_ref[...]


def actor_kernel_nonoise(x_ref, w1_ref, b1_ref, w2_ref, b2_ref, w3_ref,
                         b3_ref, o_ref):
    o_ref[...] = _mlp(x_ref, w1_ref, b1_ref, w2_ref, b2_ref, w3_ref, b3_ref)


def init_actor_params(key, state_size, action_size, hidden=128):
    """Deterministic init mimicking nn.Linear default U(-1/sqrt(fan_in), ...)."""
    ks = jax.random.split(key, 6)

    def linear(kw, kb, fan_in, fan_out):
        bound = 1.0 / jnp.sqrt(jnp.float32(fan_in))
        w = jax.random.uniform(kw, (fan_in, fan_out), jnp.float32, -bound, bound)
        b = jax.random.uniform(kb, (1, fan_out), jnp.float32, -bound, bound)
        return w, b

    w1, b1 = linear(ks[0], ks[1], state_size, hidden)
    w2, b2 = linear(ks[2], ks[3], hidden, hidden)
    w3, b3 = linear(ks[4], ks[5], hidden, action_size)
    return dict(w1=w1, b1=b1, w2=w2, b2=b2, w3=w3, b3=b3)


def actor_forward(x, params, noise=None, noise_amplitude=0.0,
                  max_block_b=MAX_BLOCK_B):
    """Pallas-fused forward pass of Actor.

    x:     (B, state_size) float32
    noise: (B, action_size) float32 standard normal
           (matches torch.normal(torch.zeros_like(x)) sampled in the glue).
    """
    B, S = x.shape
    H = params["w1"].shape[1]
    A = params["w3"].shape[1]

    tm, b_pad = _choose_tile(B, max_block_b)
    grid = (b_pad // tm,)

    # Weights are tiny & VMEM-resident -> cast to bf16 once on host.
    w1 = params["w1"].astype(jnp.bfloat16)
    w2 = params["w2"].astype(jnp.bfloat16)
    w3 = params["w3"].astype(jnp.bfloat16)
    b1 = params["b1"].astype(jnp.float32)
    b2 = params["b2"].astype(jnp.float32)
    b3 = params["b3"].astype(jnp.float32)

    x_p = x.astype(jnp.float32)
    if b_pad != B:
        x_p = jnp.pad(x_p, ((0, b_pad - B), (0, 0)))

    def resident(shape):
        # Weights/biases: same block every grid step -> stay VMEM-resident.
        return pl.BlockSpec(shape, lambda i: (0, 0))

    def batch_spec(cols):
        return pl.BlockSpec((tm, cols), lambda i: (i, 0))

    common_specs = [
        batch_spec(S),                        # x (batch-tiled, f32)
        resident((S, H)), resident((1, H)),   # fc1
        resident((H, H)), resident((1, H)),   # fc2
        resident((H, A)), resident((1, A)),   # fc3 (compact, A-wide)
    ]
    out_spec = batch_spec(A)
    compiler_params = pltpu.CompilerParams(
        dimension_semantics=("parallel",),
        vmem_limit_bytes=32 << 20,
    )

    mlp_flops = 2 * b_pad * (S * H + H * H + H * A)
    transcendentals = b_pad * (2 * H + A)
    weight_bytes = 2 * (S * H + H * H + H * A) + 4 * (2 * H + A)

    # Static zero amplitude / missing noise: skip the noise HBM stream.
    no_noise = (noise is None or
                (isinstance(noise_amplitude, (int, float))
                 and noise_amplitude == 0.0))

    if no_noise:
        cost = pl.CostEstimate(
            flops=mlp_flops,
            transcendentals=transcendentals,
            bytes_accessed=4 * b_pad * (S + A) + weight_bytes)
        out = pl.pallas_call(
            actor_kernel_nonoise,
            out_shape=jax.ShapeDtypeStruct((b_pad, A), jnp.float32),
            grid=grid,
            in_specs=common_specs,
            out_specs=out_spec,
            compiler_params=compiler_params,
            cost_estimate=cost,
        )(x_p, w1, b1, w2, b2, w3, b3)
    else:
        # TODO(synk): could generate the noise in-kernel with pltpu.prng_* to
        # drop this HBM stream entirely if the RL glue allows it.
        noise_p = noise.astype(jnp.float32)
        if b_pad != B:
            noise_p = jnp.pad(noise_p, ((0, b_pad - B), (0, 0)))
        amp = jnp.asarray(noise_amplitude, jnp.float32).reshape(1, 1)
        cost = pl.CostEstimate(
            flops=mlp_flops + 2 * b_pad * A,
            transcendentals=transcendentals,
            bytes_accessed=4 * b_pad * (S + 2 * A) + weight_bytes)
        out = pl.pallas_call(
            actor_kernel,
            out_shape=jax.ShapeDtypeStruct((b_pad, A), jnp.float32),
            grid=grid,
            in_specs=([pl.BlockSpec(memory_space=pltpu.MemorySpace.SMEM)]
                      + common_specs
                      + [batch_spec(A)]),     # noise (unscaled, compact)
            out_specs=out_spec,
            compiler_params=compiler_params,
            cost_estimate=cost,
        )(amp, x_p, w1, b1, w2, b2, w3, b3, noise_p)

    return out[:B] if b_pad != B else out


def actor_reference(x, params, noise, noise_amplitude=0.0):
    h1 = jax.nn.sigmoid(x @ params["w1"] + params["b1"])
    h2 = jax.nn.sigmoid(h1 @ params["w2"] + params["b2"])
    y = jnp.tanh(h2 @ params["w3"] + params["b3"])
    return y + noise * noise_amplitude


if __name__ == "__main__":
    key = jax.random.PRNGKey(0)
    k_param, k_x, k_noise, k_x2, k_noise2 = jax.random.split(key, 5)

    batch = 8
    state_size = 32
    action_size = 4
    noise_amplitude = 0.1

    params = init_actor_params(k_param, state_size, action_size)

    # Small-shape check (single grid step).
    x = jax.random.normal(k_x, (batch, state_size), jnp.float32)
    noise = jax.random.normal(k_noise, (batch, action_size), jnp.float32)
    out = jax.block_until_ready(actor_forward(x, params, noise, noise_amplitude))
    ref = actor_reference(x, params, noise, noise_amplitude)
    assert out.shape == (batch, action_size)
    # bf16 MXU inputs vs f32 reference -> loose-but-safe tolerance.
    assert jnp.allclose(out, ref, atol=2e-2, rtol=2e-2), "mismatch vs reference (small)"

    # Static zero-amplitude path (no-noise kernel variant).
    out0 = jax.block_until_ready(actor_forward(x, params, noise, 0.0))
    ref0 = actor_reference(x, params, noise, 0.0)
    assert out0.shape == (batch, action_size)
    assert jnp.allclose(out0, ref0, atol=2e-2, rtol=2e-2), "mismatch vs reference (amp=0)"

    # Larger, non-tile-aligned batch -> 2 balanced 520-row tiles (3 pad rows).
    big_b = 1037
    x2 = jax.random.normal(k_x2, (big_b, state_size), jnp.float32)
    noise2 = jax.random.normal(k_noise2, (big_b, action_size), jnp.float32)
    out2 = jax.block_until_ready(actor_forward(x2, params, noise2, noise_amplitude))
    ref2 = actor_reference(x2, params, noise2, noise_amplitude)
    assert out2.shape == (big_b, action_size)
    assert jnp.allclose(out2, ref2, atol=2e-2, rtol=2e-2), "mismatch vs reference (big)"

    print("KERNEL_OK")
</pallas_src>

<mosaic_0001>
module attributes {stable_mosaic.version = 11 : i64} {
  func.func @actor_kernel(%arg0: i32, %arg1: memref<1x1xf32, #tpu.memory_space<smem>>, %arg2: memref<8x32xf32, #tpu.memory_space<vmem>>, %arg3: memref<32x128xbf16, #tpu.memory_space<vmem>>, %arg4: memref<1x128xf32, #tpu.memory_space<vmem>>, %arg5: memref<128x128xbf16, #tpu.memory_space<vmem>>, %arg6: memref<1x128xf32, #tpu.memory_space<vmem>>, %arg7: memref<128x4xbf16, #tpu.memory_space<vmem>>, %arg8: memref<1x4xf32, #tpu.memory_space<vmem>>, %arg9: memref<8x4xf32, #tpu.memory_space<vmem>>, %arg10: memref<8x4xf32, #tpu.memory_space<vmem>>) attributes {dimension_semantics = [#tpu.dimension_semantics<parallel>], iteration_bounds = array<i64: 1>, scalar_prefetch = 0 : i64, scratch_operands = 0 : i64, tpu.core_type = #tpu.core_type<tc>, window_params = [{transform_indices = @transform_0, window_bounds = array<i64: 1, 1>}, {transform_indices = @transform_1, window_bounds = array<i64: 8, 32>}, {pipeline_mode = #tpu.pipeline_mode<synchronous>, transform_indices = @transform_2, window_bounds = array<i64: 32, 128>}, {pipeline_mode = #tpu.pipeline_mode<synchronous>, transform_indices = @transform_3, window_bounds = array<i64: 1, 128>}, {pipeline_mode = #tpu.pipeline_mode<synchronous>, transform_indices = @transform_4, window_bounds = array<i64: 128, 128>}, {pipeline_mode = #tpu.pipeline_mode<synchronous>, transform_indices = @transform_5, window_bounds = array<i64: 1, 128>}, {pipeline_mode = #tpu.pipeline_mode<synchronous>, transform_indices = @transform_6, window_bounds = array<i64: 128, 4>}, {pipeline_mode = #tpu.pipeline_mode<synchronous>, transform_indices = @transform_7, window_bounds = array<i64: 1, 4>}, {transform_indices = @transform_8, window_bounds = array<i64: 8, 4>}, {transform_indices = @transform_9, window_bounds = array<i64: 8, 4>}]} {
    %c0 = arith.constant 0 : index
    %c0_0 = arith.constant 0 : index
    %0 = vector.load %arg2[%c0, %c0_0] : memref<8x32xf32, #tpu.memory_space<vmem>>, vector<8x32xf32>
    %1 = arith.truncf %0 : vector<8x32xf32> to vector<8x32xbf16>
    %c0_1 = arith.constant 0 : index
    %c0_2 = arith.constant 0 : index
    %2 = vector.load %arg3[%c0_1, %c0_2] : memref<32x128xbf16, #tpu.memory_space<vmem>>, vector<32x128xbf16>
    %cst = arith.constant dense<0.000000e+00> : vector<8x128xf32>
    %3 = tpu.matmul %1, %2, %cst {dimension_numbers = #tpu.dot_dimension_numbers<[1], [0], [0], [1], [0, 0, 1, 1], [], []>} : vector<8x32xbf16>, vector<32x128xbf16>, vector<8x128xf32> -> vector<8x128xf32>
    %c0_3 = arith.constant 0 : index
    %c0_4 = arith.constant 0 : index
    %4 = vector.load %arg4[%c0_3, %c0_4] : memref<1x128xf32, #tpu.memory_space<vmem>>, vector<1x128xf32>
    %5 = vector.broadcast %4 : vector<1x128xf32> to vector<8x128xf32>
    %6 = arith.addf %3, %5 : vector<8x128xf32>
    %cst_5 = arith.constant 5.000000e-01 : f32
    %7 = vector.broadcast %cst_5 : f32 to vector<8x128xf32>
    %8 = arith.mulf %7, %6 : vector<8x128xf32>
    %9 = math.tanh %8 : vector<8x128xf32>
    %cst_6 = arith.constant 1.000000e+00 : f32
    %10 = vector.broadcast %cst_6 : f32 to vector<8x128xf32>
    %11 = arith.addf %9, %10 : vector<8x128xf32>
    %cst_7 = arith.constant 5.000000e-01 : f32
    %12 = vector.broadcast %cst_7 : f32 to vector<8x128xf32>
    %13 = arith.mulf %12, %11 : vector<8x128xf32>
    %14 = arith.truncf %13 : vector<8x128xf32> to vector<8x128xbf16>
    %c0_8 = arith.constant 0 : index
    %c0_9 = arith.constant 0 : index
    %15 = vector.load %arg5[%c0_8, %c0_9] : memref<128x128xbf16, #tpu.memory_space<vmem>>, vector<128x128xbf16>
    %cst_10 = arith.constant dense<0.000000e+00> : vector<8x128xf32>
    %16 = tpu.matmul %14, %15, %cst_10 {dimension_numbers = #tpu.dot_dimension_numbers<[1], [0], [0], [1], [0, 0, 1, 1], [], []>} : vector<8x128xbf16>, vector<128x128xbf16>, vector<8x128xf32> -> vector<8x128xf32>
    %c0_11 = arith.constant 0 : index
    %c0_12 = arith.constant 0 : index
    %17 = vector.load %arg6[%c0_11, %c0_12] : memref<1x128xf32, #tpu.memory_space<vmem>>, vector<1x128xf32>
    %18 = vector.broadcast %17 : vector<1x128xf32> to vector<8x128xf32>
    %19 = arith.addf %16, %18 : vector<8x128xf32>
    %cst_13 = arith.constant 5.000000e-01 : f32
    %20 = vector.broadcast %cst_13 : f32 to vector<8x128xf32>
    %21 = arith.mulf %20, %19 : vector<8x128xf32>
    %22 = math.tanh %21 : vector<8x128xf32>
    %cst_14 = arith.constant 1.000000e+00 : f32
    %23 = vector.broadcast %cst_14 : f32 to vector<8x128xf32>
    %24 = arith.addf %22, %23 : vector<8x128xf32>
    %cst_15 = arith.constant 5.000000e-01 : f32
    %25 = vector.broadcast %cst_15 : f32 to vector<8x128xf32>
    %26 = arith.mulf %25, %24 : vector<8x128xf32>
    %27 = arith.truncf %26 : vector<8x128xf32> to vector<8x128xbf16>
    %c0_16 = arith.constant 0 : index
    %c0_17 = arith.constant 0 : index
    %28 = vector.load %arg7[%c0_16, %c0_17] : memref<128x4xbf16, #tpu.memory_space<vmem>>, vector<128x4xbf16>
    %cst_18 = arith.constant dense<0.000000e+00> : vector<8x4xf32>
    %29 = tpu.matmul %27, %28, %cst_18 {dimension_numbers = #tpu.dot_dimension_numbers<[1], [0], [0], [1], [0, 0, 1, 1], [], []>} : vector<8x128xbf16>, vector<128x4xbf16>, vector<8x4xf32> -> vector<8x4xf32>
    %c0_19 = arith.constant 0 : index
    %c0_20 = arith.constant 0 : index
    %30 = vector.load %arg8[%c0_19, %c0_20] : memref<1x4xf32, #tpu.memory_space<vmem>>, vector<1x4xf32>
    %31 = vector.broadcast %30 : vector<1x4xf32> to vector<8x4xf32>
    %32 = arith.addf %29, %31 : vector<8x4xf32>
    %33 = math.tanh %32 : vector<8x4xf32>
    %c0_21 = arith.constant 0 : index
    %c0_22 = arith.constant 0 : index
    %34 = memref.load %arg1[%c0_21, %c0_22] : memref<1x1xf32, #tpu.memory_space<smem>>
    %c0_23 = arith.constant 0 : index
    %c0_24 = arith.constant 0 : index
    %35 = vector.load %arg9[%c0_23, %c0_24] : memref<8x4xf32, #tpu.memory_space<vmem>>, vector<8x4xf32>
    %36 = vector.broadcast %34 : f32 to vector<8x4xf32>
    %37 = arith.mulf %36, %35 : vector<8x4xf32>
    %38 = arith.addf %33, %37 : vector<8x4xf32>
    %c0_25 = arith.constant 0 : index
    %c0_26 = arith.constant 0 : index
    %39 = vector.load %arg10[%c0_25, %c0_26] : memref<8x4xf32, #tpu.memory_space<vmem>>, vector<8x4xf32>
    tpu.vector_store %arg10[%c0_25, %c0_26], %38 {strides = array<i32>} : memref<8x4xf32, #tpu.memory_space<vmem>>, vector<8x4xf32>,
    return
  }
  func.func @transform_0(%arg0: i32) -> (i32, i32) {
    %c0_i32 = arith.constant 0 : i32
    %c0_i32_0 = arith.constant 0 : i32
    %c0_i32_1 = arith.constant 0 : i32
    return %c0_i32, %c0_i32_0 : i32, i32
  }
  func.func @transform_1(%arg0: i32) -> (i32, i32) {
    %c0_i32 = arith.constant 0 : i32
    %c0_i32_0 = arith.constant 0 : i32
    return %arg0, %c0_i32 : i32, i32
  }
  func.func @transform_2(%arg0: i32) -> (i32, i32) {
    %c0_i32 = arith.constant 0 : i32
    %c0_i32_0 = arith.constant 0 : i32
    %c0_i32_1 = arith.constant 0 : i32
    return %c0_i32, %c0_i32_0 : i32, i32
  }
  func.func @transform_3(%arg0: i32) -> (i32, i32) {
    %c0_i32 = arith.constant 0 : i32
    %c0_i32_0 = arith.constant 0 : i32
    %c0_i32_1 = arith.constant 0 : i32
    return %c0_i32, %c0_i32_0 : i32, i32
  }
  func.func @transform_4(%arg0: i32) -> (i32, i32) {
    %c0_i32 = arith.constant 0 : i32
    %c0_i32_0 = arith.constant 0 : i32
    %c0_i32_1 = arith.constant 0 : i32
    return %c0_i32, %c0_i32_0 : i32, i32
  }
  func.func @transform_5(%arg0: i32) -> (i32, i32) {
    %c0_i32 = arith.constant 0 : i32
    %c0_i32_0 = arith.constant 0 : i32
    %c0_i32_1 = arith.constant 0 : i32
    return %c0_i32, %c0_i32_0 : i32, i32
  }
  func.func @transform_6(%arg0: i32) -> (i32, i32) {
    %c0_i32 = arith.constant 0 : i32
    %c0_i32_0 = arith.constant 0 : i32
    %c0_i32_1 = arith.constant 0 : i32
    return %c0_i32, %c0_i32_0 : i32, i32
  }
  func.func @transform_7(%arg0: i32) -> (i32, i32) {
    %c0_i32 = arith.constant 0 : i32
    %c0_i32_0 = arith.constant 0 : i32
    %c0_i32_1 = arith.constant 0 : i32
    return %c0_i32, %c0_i32_0 : i32, i32
  }
  func.func @transform_8(%arg0: i32) -> (i32, i32) {
    %c0_i32 = arith.constant 0 : i32
    %c0_i32_0 = arith.constant 0 : i32
    return %arg0, %c0_i32 : i32, i32
  }
  func.func @transform_9(%arg0: i32) -> (i32, i32) {
    %c0_i32 = arith.constant 0 : i32
    %c0_i32_0 = arith.constant 0 : i32
    return %arg0, %c0_i32 : i32, i32
  }
}

</mosaic_0001>

<llo_original>
// kernel: tpu_custom_call.1
$region0: #{tpu_custom_call.1}
  #allocation0 [shape = 'u32[]', space=smem, size = 0x4, offset = 0x4, fixed_abs, tag = 'smem constant byte address 0x4 - core index']
  #allocation1 [shape = 'u32[144,128]{1,0:T(1,128)}', space=vmem, size = 0x12000, scoped, tag = 'internal scratch']
  #allocation2 [shape = 'f32[1,1]{1,0:T(1,128)S(6)}', space=smem, size = 0x200, scoped, tag = 'scoped memory for tpu_custom_call.1']
  %s0 = inlined_call_operand.<no memory space> [shape: f32[1,1], index: 0, kind: input, shape index: {}]
  %s1 = inlined_call_operand.vmem [shape: f32[8,32], index: 1, kind: input, shape index: {}]
  %s2 = inlined_call_operand.vmem [shape: bf16[32,128], index: 2, kind: input, shape index: {}]
  %s3 = inlined_call_operand.vmem [shape: f32[1,128], index: 3, kind: input, shape index: {}]
  %s4 = inlined_call_operand.vmem [shape: bf16[128,128], index: 4, kind: input, shape index: {}]
  %s5 = inlined_call_operand.vmem [shape: f32[1,128], index: 5, kind: input, shape index: {}]
  %s6 = inlined_call_operand.vmem [shape: bf16[128,4], index: 6, kind: input, shape index: {}]
  %s7 = inlined_call_operand.vmem [shape: f32[1,4], index: 7, kind: input, shape index: {}]
  %s8 = inlined_call_operand.vmem [shape: f32[8,4], index: 8, kind: input, shape index: {}]
  %s9 = inlined_call_operand.vmem [shape: f32[8,4], index: 9, kind: output, shape index: {}]
  %s10 = sld [smem:[#allocation0]]
  $region46: #{tpu_custom_call.1} parent=0
    _
  %s12 = ssub.s32 1, %s10
  %s13 = scalar_select 0, %s12, %s10
  %14 = sst [smem:[#allocation2]] %s0
  // Predicated region
  $region2: #{tpu_custom_call.1} parent=0 // pred_check
    _
  $region3: #{tpu_custom_call.1} parent=0 // pred_check_branch
    %16 = sbr.rel (0) target = $region5
  $region4: #{tpu_custom_call.1} parent=0 // pred_region
    _
  $region5: #{tpu_custom_call.1} parent=0 // pred_fallthru
    _
  // Predicated region
  $region6: #{tpu_custom_call.1} parent=0 // pred_check
    _
  $region7: #{tpu_custom_call.1} parent=0 // pred_check_branch
    %18 = sbr.rel (0) target = $region9
  $region8: #{tpu_custom_call.1} parent=0 // pred_region
    _
  $region9: #{tpu_custom_call.1} parent=0 // pred_fallthru
    _
  // Predicated region
  $region10: #{tpu_custom_call.1} parent=0 // pred_check
    _
  $region11: #{tpu_custom_call.1} parent=0 // pred_check_branch
    %20 = sbr.rel (0) target = $region13
  $region12: #{tpu_custom_call.1} parent=0 // pred_region
    _
  $region13: #{tpu_custom_call.1} parent=0 // pred_fallthru
    _
  // Predicated region
  $region14: #{tpu_custom_call.1} parent=0 // pred_check
    _
  $region15: #{tpu_custom_call.1} parent=0 // pred_check_branch
    %22 = sbr.rel (0) target = $region17
  $region16: #{tpu_custom_call.1} parent=0 // pred_region
    _
  $region17: #{tpu_custom_call.1} parent=0 // pred_fallthru
    _
  // Predicated region
  $region18: #{tpu_custom_call.1} parent=0 // pred_check
    _
  $region19: #{tpu_custom_call.1} parent=0 // pred_check_branch
    %24 = sbr.rel (0) target = $region21
  $region20: #{tpu_custom_call.1} parent=0 // pred_region
    _
  $region21: #{tpu_custom_call.1} parent=0 // pred_fallthru
    _
  // Predicated region
  $region22: #{tpu_custom_call.1} parent=0 // pred_check
    _
  $region23: #{tpu_custom_call.1} parent=0 // pred_check_branch
    %26 = sbr.rel (0) target = $region25
  $region24: #{tpu_custom_call.1} parent=0 // pred_region
    _
  $region25: #{tpu_custom_call.1} parent=0 // pred_fallthru
    _
  // Predicated region
  $region26: #{tpu_custom_call.1} parent=0 // pred_check
    _
  $region27: #{tpu_custom_call.1} parent=0 // pred_check_branch
    %28 = sbr.rel (0) target = $region29
  $region28: #{tpu_custom_call.1} parent=0 // pred_region
    _
  $region29: #{tpu_custom_call.1} parent=0 // pred_fallthru
    _
  // Predicated region
  $region30: #{tpu_custom_call.1} parent=0 // pred_check
    _
  $region31: #{tpu_custom_call.1} parent=0 // pred_check_branch
    %30 = sbr.rel (0) target = $region33
  $region32: #{tpu_custom_call.1} parent=0 // pred_region
    _
  $region33: #{tpu_custom_call.1} parent=0 // pred_fallthru
    _
  // Predicated region
  $region34: #{tpu_custom_call.1} parent=0 // pred_check
    _
  $region35: #{tpu_custom_call.1} parent=0 // pred_check_branch
    %32 = sbr.rel (0) target = $region37
  $region36: #{tpu_custom_call.1} parent=0 // pred_region
    _
  $region37: #{tpu_custom_call.1} parent=0 // pred_fallthru
    _
  %v34 = vld [vmem:[%s1] sm:$0xff]
  %v35 = vpack.c.bf16 %v34, %v34
  %v36 = vld [vmem:[%s2] sm:$0xf]
  %v37 = vld [vmem:[%s2 + $0x4] sm:$0xf]
  %v38 = vld [vmem:[%s2 + $0x8] sm:$0xf]
  %v39 = vld [vmem:[%s2 + $0xc] sm:$0xf]
  %v40 = vld [vmem:[%s3] sm:$0x1]
  %v42 = vlaneseq
  %v43 = vshrl.u32 %v42, 7
  %v44 = vsub.s32 0, %v43
  %v45 = vrot.slane %v40, %v44
  %v51 = vunpack.c.l.b16 %v36
  %v52 = vunpack.c.l.b16 %v37
  %v53 = vunpack.c.l.b16 %v38
  %v54 = vunpack.c.l.b16 %v39
  %v55 = vpack.c.b16 %v52, %v51
  %v56 = vpack.c.b16 %v54, %v53
  %vm59 = vcmask 261120
  %v61 = vsel %vm59, %v35, 0
  %63 = vmatprep.subr.bf16.mxu0 0
  %64 = vmatpush1.bf16.msra.mxu0 %v55
  %65 = vmatprep.subr.bf16.mxu0 0
  %66 = vmatpush1.bf16.msra.mxu0 %v56
  %67 = vmatprep.subr.bf16.mxu0 0
  %68 = vmatpush1.bf16.msra.mxu0 0
  %69 = vmatprep.subr.bf16.mxu0 0
  %70 = vmatpush1.bf16.msra.mxu0 0
  %71 = vmatprep.subr.bf16.mxu0 0
  %72 = vmatpush1.bf16.msra.mxu0 0
  %73 = vmatprep.subr.bf16.mxu0 0
  %74 = vmatpush1.bf16.msra.mxu0 0
  %75 = vmatprep.subr.bf16.mxu0 0
  %76 = vmatpush1.bf16.msra.mxu0 0
  %77 = vmatprep.subr.bf16.mxu0 0
  %78 = vmatpush1.bf16.msra.mxu0 0
  %79 = vmatprep.subr.bf16.mxu0 0
  %80 = vmatpush1.bf16.msra.mxu0 0
  %81 = vmatprep.subr.bf16.mxu0 0
  %82 = vmatpush1.bf16.msra.mxu0 0
  %83 = vmatprep.subr.bf16.mxu0 0
  %84 = vmatpush1.bf16.msra.mxu0 0
  %85 = vmatprep.subr.bf16.mxu0 0
  %86 = vmatpush1.bf16.msra.mxu0 0
  %87 = vmatprep.subr.bf16.mxu0 0
  %88 = vmatpush1.bf16.msra.mxu0 0
  %89 = vmatprep.subr.bf16.mxu0 0
  %90 = vmatpush1.bf16.msra.mxu0 0
  %91 = vmatprep.subr.bf16.mxu0 0
  %92 = vmatpush1.bf16.msra.mxu0 0
  %93 = vmatprep.subr.bf16.mxu0 0
  %94 = vmatpush1.bf16.msra.mxu0 0
  %95 = vmatprep.mubr.bf16.mxu0 0
  %96 = vmatmul.mubr.bf16.gmra.mrb[0].mxu0 %v61
  %v97 = vpop.f32.mrb[0].mxu0
  %v98 = vadd.f32 %v45, %v97
  %v99 = vpop.f32.mrb[0].mxu0
  %v100 = vpop.f32.mrb[0].mxu0
  %v101 = vpop.f32.mrb[0].mxu0
  %102 = vdwg.mxu0
  %v103 = vmul.f32 %v98, 0.5
  %v104 = vtanh.pop %v103
  %v105 = vadd.f32 %v104, 1.0
  %v106 = vmul.f32 %v105, 0.5
  %v107 = vpack.c.bf16 %v106, %v106
  %v108 = vld [vmem:[%s4] sm:$0xf]
  %v109 = vld [vmem:[%s4 + $0x4] sm:$0xf]
  %v110 = vld [vmem:[%s4 + $0x8] sm:$0xf]
  %v111 = vld [vmem:[%s4 + $0xc] sm:$0xf]
  %v112 = vld [vmem:[%s4 + $0x10] sm:$0xf]
  %v113 = vld [vmem:[%s4 + $0x14] sm:$0xf]
  %v114 = vld [vmem:[%s4 + $0x18] sm:$0xf]
  %v115 = vld [vmem:[%s4 + $0x1c] sm:$0xf]
  %v116 = vld [vmem:[%s4 + $0x20] sm:$0xf]
  %v117 = vld [vmem:[%s4 + $0x24] sm:$0xf]
  %v118 = vld [vmem:[%s4 + $0x28] sm:$0xf]
  %v119 = vld [vmem:[%s4 + $0x2c] sm:$0xf]
  %v120 = vld [vmem:[%s4 + $0x30] sm:$0xf]
  %v121 = vld [vmem:[%s4 + $0x34] sm:$0xf]
  %v122 = vld [vmem:[%s4 + $0x38] sm:$0xf]
  %v123 = vld [vmem:[%s4 + $0x3c] sm:$0xf]
  %v124 = vld [vmem:[%s5] sm:$0x1]
  %v126 = vlaneseq
  %v127 = vshrl.u32 %v126, 7
  %v128 = vsub.s32 0, %v127
  %v129 = vrot.slane %v124, %v128
  %v147 = vunpack.c.l.b16 %v108
  %v148 = vunpack.c.l.b16 %v109
  %v149 = vunpack.c.l.b16 %v110
  %v150 = vunpack.c.l.b16 %v111
  %v151 = vunpack.c.l.b16 %v112
  %v152 = vunpack.c.l.b16 %v113
  %v153 = vunpack.c.l.b16 %v114
  %v154 = vunpack.c.l.b16 %v115
  %v155 = vunpack.c.l.b16 %v116
  %v156 = vunpack.c.l.b16 %v117
  %v157 = vunpack.c.l.b16 %v118
  %v158 = vunpack.c.l.b16 %v119
  %v159 = vunpack.c.l.b16 %v120
  %v160 = vunpack.c.l.b16 %v121
  %v161 = vunpack.c.l.b16 %v122
  %v162 = vunpack.c.l.b16 %v123
  %v163 = vpack.c.b16 %v148, %v147
  %v164 = vpack.c.b16 %v150, %v149
  %v165 = vpack.c.b16 %v152, %v151
  %v166 = vpack.c.b16 %v154, %v153
  %v167 = vpack.c.b16 %v156, %v155
  %v168 = vpack.c.b16 %v158, %v157
  %v169 = vpack.c.b16 %v160, %v159
  %v170 = vpack.c.b16 %v162, %v161
  %179 = vmatprep.subr.bf16.mxu0 0
  %180 = vmatpush1.bf16.msra.mxu0 %v163
  %181 = vmatprep.subr.bf16.mxu0 0
  %182 = vmatpush1.bf16.msra.mxu0 %v164
  %183 = vmatprep.subr.bf16.mxu0 0
  %184 = vmatpush1.bf16.msra.mxu0 %v165
  %185 = vmatprep.subr.bf16.mxu0 0
  %186 = vmatpush1.bf16.msra.mxu0 %v166
  %187 = vmatprep.subr.bf16.mxu0 0
  %188 = vmatpush1.bf16.msra.mxu0 %v167
  %189 = vmatprep.subr.bf16.mxu0 0
  %190 = vmatpush1.bf16.msra.mxu0 %v168
  %191 = vmatprep.subr.bf16.mxu0 0
  %192 = vmatpush1.bf16.msra.mxu0 %v169
  %193 = vmatprep.subr.bf16.mxu0 0
  %194 = vmatpush1.bf16.msra.mxu0 %v170
  %195 = vmatprep.subr.bf16.mxu0 0
  %196 = vmatpush1.bf16.msra.mxu0 0
  %197 = vmatprep.subr.bf16.mxu0 0
  %198 = vmatpush1.bf16.msra.mxu0 0
  %199 = vmatprep.subr.bf16.mxu0 0
  %200 = vmatpush1.bf16.msra.mxu0 0
  %201 = vmatprep.subr.bf16.mxu0 0
  %202 = vmatpush1.bf16.msra.mxu0 0
  %203 = vmatprep.subr.bf16.mxu0 0
  %204 = vmatpush1.bf16.msra.mxu0 0
  %205 = vmatprep.subr.bf16.mxu0 0
  %206 = vmatpush1.bf16.msra.mxu0 0
  %207 = vmatprep.subr.bf16.mxu0 0
  %208 = vmatpush1.bf16.msra.mxu0 0
  %209 = vmatprep.subr.bf16.mxu0 0
  %210 = vmatpush1.bf16.msra.mxu0 0
  %211 = vmatprep.mubr.bf16.mxu0 0
  %212 = vmatmul.mubr.bf16.gmra.mrb[0].mxu0 %v107
  %v213 = vpop.f32.mrb[0].mxu0
  %v214 = vadd.f32 %v129, %v213
  %v215 = vpop.f32.mrb[0].mxu0
  %v216 = vpop.f32.mrb[0].mxu0
  %v217 = vpop.f32.mrb[0].mxu0
  %218 = vdwg.mxu0
  %v219 = vmul.f32 %v214, 0.5
  %v220 = vtanh.pop %v219
  %v221 = vadd.f32 %v220, 1.0
  %v222 = vmul.f32 %v221, 0.5
  %v223 = vpack.c.bf16 %v222, %v222
  %v224 = vld [vmem:[%s6] sm:$0xf]
  %v225 = vld [vmem:[%s6 + $0x4] sm:$0xf]
  %v226 = vld [vmem:[%s6 + $0x8] sm:$0xf]
  %v227 = vld [vmem:[%s6 + $0xc] sm:$0xf]
  %v228 = vld [vmem:[%s6 + $0x10] sm:$0xf]
  %v229 = vld [vmem:[%s6 + $0x14] sm:$0xf]
  %v230 = vld [vmem:[%s6 + $0x18] sm:$0xf]
  %v231 = vld [vmem:[%s6 + $0x1c] sm:$0xf]
  %v232 = vld [vmem:[%s6 + $0x20] sm:$0xf]
  %v233 = vld [vmem:[%s6 + $0x24] sm:$0xf]
  %v234 = vld [vmem:[%s6 + $0x28] sm:$0xf]
  %v235 = vld [vmem:[%s6 + $0x2c] sm:$0xf]
  %v236 = vld [vmem:[%s6 + $0x30] sm:$0xf]
  %v237 = vld [vmem:[%s6 + $0x34] sm:$0xf]
  %v238 = vld [vmem:[%s6 + $0x38] sm:$0xf]
  %v239 = vld [vmem:[%s6 + $0x3c] sm:$0xf]
  %v240 = vld [vmem:[%s7] sm:$0x1]
  %v242 = vlaneseq
  %v243 = vshrl.u32 %v242, 7
  %v244 = vsub.s32 0, %v243
  %v245 = vrot.slane %v240, %v244
  %v263 = vunpack.c.l.b16 %v224
  %v264 = vunpack.c.l.b16 %v225
  %v265 = vunpack.c.l.b16 %v226
  %v266 = vunpack.c.l.b16 %v227
  %v267 = vunpack.c.l.b16 %v228
  %v268 = vunpack.c.l.b16 %v229
  %v269 = vunpack.c.l.b16 %v230
  %v270 = vunpack.c.l.b16 %v231
  %v271 = vunpack.c.l.b16 %v232
  %v272 = vunpack.c.l.b16 %v233
  %v273 = vunpack.c.l.b16 %v234
  %v274 = vunpack.c.l.b16 %v235
  %v275 = vunpack.c.l.b16 %v236
  %v276 = vunpack.c.l.b16 %v237
  %v277 = vunpack.c.l.b16 %v238
  %v278 = vunpack.c.l.b16 %v239
  %v279 = vpack.c.b16 %v264, %v263
  %v280 = vpack.c.b16 %v266, %v265
  %v281 = vpack.c.b16 %v268, %v267
  %v282 = vpack.c.b16 %v270, %v269
  %v283 = vpack.c.b16 %v272, %v271
  %v284 = vpack.c.b16 %v274, %v273
  %v285 = vpack.c.b16 %v276, %v275
  %v286 = vpack.c.b16 %v278, %v277
  %295 = vmatprep.subr.bf16.mxu0 0
  %296 = vmatpush1.bf16.msra.mxu0 %v279
  %297 = vmatprep.subr.bf16.mxu0 0
  %298 = vmatpush1.bf16.msra.mxu0 %v280
  %299 = vmatprep.subr.bf16.mxu0 0
  %300 = vmatpush1.bf16.msra.mxu0 %v281
  %301 = vmatprep.subr.bf16.mxu0 0
  %302 = vmatpush1.bf16.msra.mxu0 %v282
  %303 = vmatprep.subr.bf16.mxu0 0
  %304 = vmatpush1.bf16.msra.mxu0 %v283
  %305 = vmatprep.subr.bf16.mxu0 0
  %306 = vmatpush1.bf16.msra.mxu0 %v284
  %307 = vmatprep.subr.bf16.mxu0 0
  %308 = vmatpush1.bf16.msra.mxu0 %v285
  %309 = vmatprep.subr.bf16.mxu0 0
  %310 = vmatpush1.bf16.msra.mxu0 %v286
  %311 = vmatprep.subr.bf16.mxu0 0
  %312 = vmatpush1.bf16.msra.mxu0 0
  %313 = vmatprep.subr.bf16.mxu0 0
  %314 = vmatpush1.bf16.msra.mxu0 0
  %315 = vmatprep.subr.bf16.mxu0 0
  %316 = vmatpush1.bf16.msra.mxu0 0
  %317 = vmatprep.subr.bf16.mxu0 0
  %318 = vmatpush1.bf16.msra.mxu0 0
  %319 = vmatprep.subr.bf16.mxu0 0
  %320 = vmatpush1.bf16.msra.mxu0 0
  %321 = vmatprep.subr.bf16.mxu0 0
  %322 = vmatpush1.bf16.msra.mxu0 0
  %323 = vmatprep.subr.bf16.mxu0 0
  %324 = vmatpush1.bf16.msra.mxu0 0
  %325 = vmatprep.subr.bf16.mxu0 0
  %326 = vmatpush1.bf16.msra.mxu0 0
  %327 = vmatprep.mubr.bf16.mxu0 0
  %328 = vmatmul.mubr.bf16.gmra.mrb[0].mxu0 %v223
  %v329 = vpop.f32.mrb[0].mxu0
  %v330 = vadd.f32 %v245, %v329
  %v331 = vpop.f32.mrb[0].mxu0
  %v332 = vpop.f32.mrb[0].mxu0
  %v333 = vpop.f32.mrb[0].mxu0
  %334 = vdwg.mxu0
  %v335 = vtanh.pop %v330
  %s336 = sld [smem:[#allocation2]]
  %v337 = vld [vmem:[%s8] sm:$0xff]
  %v338 = vstv %s336
  %v339 = vmul.f32 %v338, %v337
  %v340 = vadd.f32 %v335, %v339
  %vm341 = vcmask 31744
  %342 = vst.msk [vmem:[%s9] sm:$0xff] %vm341, %v340
  // Predicated region
  $region38: #{tpu_custom_call.1} parent=0 // pred_check
    _
  $region39: #{tpu_custom_call.1} parent=0 // pred_check_branch
    %344 = sbr.rel (0) target = $region41
  $region40: #{tpu_custom_call.1} parent=0 // pred_region
    _
  $region41: #{tpu_custom_call.1} parent=0 // pred_fallthru
    _
  // Predicated region
  $region42: #{tpu_custom_call.1} parent=0 // pred_check
    _
  $region43: #{tpu_custom_call.1} parent=0 // pred_check_branch
    %346 = sbr.rel (0) target = $region45
  $region44: #{tpu_custom_call.1} parent=0 // pred_region
    _
  $region45: #{tpu_custom_call.1} parent=0 // pred_fallthru
    _

</llo_original>
